<compile_context>
chip_gen: v6e
topology: v6e:2x2x1
jax: 0.10.0
libtpu: 0.0.40
codegen_flags: <defaults>
</compile_context>

<pallas_src>
import functools

import jax
import jax.numpy as jnp
from jax.experimental import pallas as pl
from jax.experimental.pallas import tpu as pltpu

LANE = 128  # batch tiles live on the 128-lane axis


def _round_up(x, m):
    return (x + m - 1) // m * m


def _sublane_multiple(dtype):
    # bf16 packs 16 sublanes per vreg; f32 packs 8.
    return 16 if jnp.dtype(dtype) == jnp.dtype(jnp.bfloat16) else 8


def dqn_kernel(x_ref, w1_ref, b1_ref, w2_ref, b2_ref, w3_ref, b3_ref, o_ref):
    """Batch-on-lanes fused MLP: o = W3 @ relu(W2 @ relu(W1 @ x + b1) + b2) + b3.

    x_ref : (state_pad, tb)      -- batch on the lane axis
    wN    : (out_pad, in_pad)    -- PyTorch nn.Linear layout, zero-padded
    bN    : (out_pad, 1) f32     -- broadcast along lanes
    o_ref : (action_pad, tb) f32
    """
    h1 = jnp.dot(w1_ref[...], x_ref[...], preferred_element_type=jnp.float32)
    h1 = jnp.maximum(h1 + b1_ref[...], 0.0)            # f32 elementwise (v5e-safe)
    h2 = jnp.dot(w2_ref[...], h1.astype(w2_ref.dtype),
                 preferred_element_type=jnp.float32)
    h2 = jnp.maximum(h2 + b2_ref[...], 0.0)
    out = jnp.dot(w3_ref[...], h2.astype(w3_ref.dtype),
                  preferred_element_type=jnp.float32)
    o_ref[...] = (out + b3_ref[...]).astype(o_ref.dtype)


def prepare_params(params, compute_dtype=jnp.bfloat16):
    """Pad / cast parameters ONCE (hoisted out of the per-call forward).

    params: PyTorch-layout tuple (w1, b1, w2, b2, w3, b3); w: (out, in), b: (out,).
    Padded rows/cols carry zero weight + zero bias, so numerics are exact.
    """
    w1, b1, w2, b2, w3, b3 = params
    sub = _sublane_multiple(compute_dtype)
    state = w1.shape[1]
    hidden = w1.shape[0]
    action = w3.shape[0]
    sp = _round_up(state, sub)
    hp = _round_up(hidden, sub)
    ap = _round_up(action, sub)

    def pad_w(w, rows, cols):
        return jnp.pad(w, ((0, rows - w.shape[0]), (0, cols - w.shape[1]))
                       ).astype(compute_dtype)

    def pad_b(b, rows):
        return jnp.pad(b.reshape(-1, 1), ((0, rows - b.shape[0]), (0, 0))
                       ).astype(jnp.float32)

    return (pad_w(w1, hp, sp), pad_b(b1, hp),
            pad_w(w2, hp, hp), pad_b(b2, hp),
            pad_w(w3, ap, hp), pad_b(b3, ap))


@functools.partial(jax.jit, static_argnames=("action_size", "tile_b"))
def dqn_forward(x, padded_params, *, action_size, tile_b=2048):
    """x: (B, state_size) f32; padded_params from prepare_params()."""
    w1p, b1p, w2p, b2p, w3p, b3p = padded_params
    B, state_size = x.shape
    hp, sp = w1p.shape
    ap = w3p.shape[0]
    cdt = w1p.dtype

    # --- batch tile on the lane axis ---------------------------------------
    tb = _round_up(min(tile_b, _round_up(B, LANE)), LANE)
    if B > LANE and _round_up(B, tb) // tb < 2:
        # guarantee >= 2 grid steps so "parallel" can use both v7x TensorCores
        tb = _round_up(-(-_round_up(B, LANE) // 2), LANE)
    bp = _round_up(B, tb)
    grid = (bp // tb,)

    # x -> (state_pad, batch_pad): wrapper-side transpose is layout plumbing.
    xt = jnp.pad(x.T.astype(cdt), ((0, sp - state_size), (0, bp - B)))

    def resident(shape):
        # constant index_map -> DMA'd once, stays resident in VMEM across steps
        return pl.BlockSpec(shape, lambda i: (0, 0))

    flops = 2 * bp * (sp * hp + hp * hp + hp * ap)
    bytes_accessed = (
        xt.size * xt.dtype.itemsize
        + sum(a.size * a.dtype.itemsize
              for a in (w1p, b1p, w2p, b2p, w3p, b3p))
        + bp * ap * 4)

    out_t = pl.pallas_call(
        dqn_kernel,
        out_shape=jax.ShapeDtypeStruct((ap, bp), jnp.float32),
        grid=grid,
        in_specs=[
            pl.BlockSpec((sp, tb), lambda i: (0, i)),  # x: tiled over batch lanes
            resident(w1p.shape), resident(b1p.shape),
            resident(w2p.shape), resident(b2p.shape),
            resident(w3p.shape), resident(b3p.shape),
        ],
        out_specs=pl.BlockSpec((ap, tb), lambda i: (0, i)),
        compiler_params=pltpu.CompilerParams(
            dimension_semantics=("parallel",)),
        cost_estimate=pl.CostEstimate(
            flops=flops, transcendentals=0, bytes_accessed=bytes_accessed),
    )(xt, w1p, b1p, w2p, b2p, w3p, b3p)

    # strip padding, transpose back to (B, action_size)
    return out_t[:action_size, :B].T


def dqn_reference(x, params, compute_dtype=jnp.float32):
    """Pure-JAX reference mirroring the kernel's dtype handling."""
    w1, b1, w2, b2, w3, b3 = params

    def lin(a, w, b):
        return jnp.dot(a.astype(compute_dtype), w.T.astype(compute_dtype),
                       preferred_element_type=jnp.float32,
                       precision=jax.lax.Precision.HIGHEST) + b

    h1 = jnp.maximum(lin(x, w1, b1), 0.0)
    h2 = jnp.maximum(lin(h1, w2, b2), 0.0)
    return lin(h2, w3, b3)


def init_params(key, state_size, action_size, hidden_size=64):
    """nn.Linear-style init; weights kept in PyTorch (out_features, in_features) layout."""
    ks = jax.random.split(key, 6)

    def linear(kw, kb, fan_in, fan_out):
        bound = 1.0 / jnp.sqrt(jnp.float32(fan_in))
        w = jax.random.uniform(kw, (fan_out, fan_in), jnp.float32, -bound, bound)
        b = jax.random.uniform(kb, (fan_out,), jnp.float32, -bound, bound)
        return w, b

    w1, b1 = linear(ks[0], ks[1], state_size, hidden_size)
    w2, b2 = linear(ks[2], ks[3], hidden_size, hidden_size)
    w3, b3 = linear(ks[4], ks[5], hidden_size, action_size)
    return (w1, b1, w2, b2, w3, b3)


if __name__ == "__main__":
    key = jax.random.PRNGKey(0)
    k_param, k_x, k_x2 = jax.random.split(key, 3)

    batch, state_size, action_size, hidden_size = 2, 8, 4, 64
    params = init_params(k_param, state_size, action_size, hidden_size)
    x = jax.random.normal(k_x, (batch, state_size), dtype=jnp.float32)

    # f32 storage path: exact (padding rows/cols are zero through ReLU).
    p_f32 = prepare_params(params, jnp.float32)
    out = dqn_forward(x, p_f32, action_size=action_size)
    jax.block_until_ready(out)
    ref = dqn_reference(x, params, jnp.float32)
    assert out.shape == (batch, action_size)
    assert jnp.allclose(out, ref, atol=1e-4, rtol=1e-4)

    # bf16 storage path (recommended on v6e/v7x): f32 accumulation, looser tol.
    p_bf16 = prepare_params(params, jnp.bfloat16)
    out_bf16 = dqn_forward(x, p_bf16, action_size=action_size)
    jax.block_until_ready(out_bf16)
    ref_bf16 = dqn_reference(x, params, jnp.bfloat16)
    assert out_bf16.shape == (batch, action_size)
    assert jnp.allclose(out_bf16, ref_bf16, atol=2e-2, rtol=2e-2)

    # medium batch: exercises batch padding + >=2 grid steps (v7x megacore split).
    xb = jax.random.normal(k_x2, (300, state_size), dtype=jnp.float32)
    out_b = dqn_forward(xb, p_f32, action_size=action_size)
    jax.block_until_ready(out_b)
    ref_b = dqn_reference(xb, params, jnp.float32)
    assert out_b.shape == (300, action_size)
    assert jnp.allclose(out_b, ref_b, atol=1e-4, rtol=1e-4)

    print("KERNEL_OK")
</pallas_src>

<mosaic_0001>
module attributes {stable_mosaic.version = 11 : i64} {
  func.func @dqn_kernel(%arg0: i32, %arg1: memref<8x128xf32, #tpu.memory_space<vmem>>, %arg2: memref<64x8xf32, #tpu.memory_space<vmem>>, %arg3: memref<64x1xf32, #tpu.memory_space<vmem>>, %arg4: memref<64x64xf32, #tpu.memory_space<vmem>>, %arg5: memref<64x1xf32, #tpu.memory_space<vmem>>, %arg6: memref<8x64xf32, #tpu.memory_space<vmem>>, %arg7: memref<8x1xf32, #tpu.memory_space<vmem>>, %arg8: memref<8x128xf32, #tpu.memory_space<vmem>>) attributes {dimension_semantics = [#tpu.dimension_semantics<parallel>], iteration_bounds = array<i64: 1>, scalar_prefetch = 0 : i64, scratch_operands = 0 : i64, tpu.core_type = #tpu.core_type<tc>, window_params = [{transform_indices = @transform_0, window_bounds = array<i64: 8, 128>}, {pipeline_mode = #tpu.pipeline_mode<synchronous>, transform_indices = @transform_1, window_bounds = array<i64: 64, 8>}, {pipeline_mode = #tpu.pipeline_mode<synchronous>, transform_indices = @transform_2, window_bounds = array<i64: 64, 1>}, {pipeline_mode = #tpu.pipeline_mode<synchronous>, transform_indices = @transform_3, window_bounds = array<i64: 64, 64>}, {pipeline_mode = #tpu.pipeline_mode<synchronous>, transform_indices = @transform_4, window_bounds = array<i64: 64, 1>}, {pipeline_mode = #tpu.pipeline_mode<synchronous>, transform_indices = @transform_5, window_bounds = array<i64: 8, 64>}, {pipeline_mode = #tpu.pipeline_mode<synchronous>, transform_indices = @transform_6, window_bounds = array<i64: 8, 1>}, {transform_indices = @transform_7, window_bounds = array<i64: 8, 128>}]} {
    %c0 = arith.constant 0 : index
    %c0_0 = arith.constant 0 : index
    %0 = vector.load %arg2[%c0, %c0_0] : memref<64x8xf32, #tpu.memory_space<vmem>>, vector<64x8xf32>
    %c0_1 = arith.constant 0 : index
    %c0_2 = arith.constant 0 : index
    %1 = vector.load %arg1[%c0_1, %c0_2] : memref<8x128xf32, #tpu.memory_space<vmem>>, vector<8x128xf32>
    %cst = arith.constant dense<0.000000e+00> : vector<64x128xf32>
    %2 = tpu.matmul %0, %1, %cst {dimension_numbers = #tpu.dot_dimension_numbers<[1], [0], [0], [1], [0, 0, 1, 1], [], []>} : vector<64x8xf32>, vector<8x128xf32>, vector<64x128xf32> -> vector<64x128xf32>
    %c0_3 = arith.constant 0 : index
    %c0_4 = arith.constant 0 : index
    %3 = vector.load %arg3[%c0_3, %c0_4] : memref<64x1xf32, #tpu.memory_space<vmem>>, vector<64x1xf32>
    %4 = vector.broadcast %3 : vector<64x1xf32> to vector<64x128xf32>
    %5 = arith.addf %2, %4 : vector<64x128xf32>
    %cst_5 = arith.constant 0.000000e+00 : f32
    %6 = vector.broadcast %cst_5 : f32 to vector<64x128xf32>
    %7 = arith.maximumf %5, %6 : vector<64x128xf32>
    %c0_6 = arith.constant 0 : index
    %c0_7 = arith.constant 0 : index
    %8 = vector.load %arg4[%c0_6, %c0_7] : memref<64x64xf32, #tpu.memory_space<vmem>>, vector<64x64xf32>
    %cst_8 = arith.constant dense<0.000000e+00> : vector<64x128xf32>
    %9 = tpu.matmul %8, %7, %cst_8 {dimension_numbers = #tpu.dot_dimension_numbers<[1], [0], [0], [1], [0, 0, 1, 1], [], []>} : vector<64x64xf32>, vector<64x128xf32>, vector<64x128xf32> -> vector<64x128xf32>
    %c0_9 = arith.constant 0 : index
    %c0_10 = arith.constant 0 : index
    %10 = vector.load %arg5[%c0_9, %c0_10] : memref<64x1xf32, #tpu.memory_space<vmem>>, vector<64x1xf32>
    %11 = vector.broadcast %10 : vector<64x1xf32> to vector<64x128xf32>
    %12 = arith.addf %9, %11 : vector<64x128xf32>
    %cst_11 = arith.constant 0.000000e+00 : f32
    %13 = vector.broadcast %cst_11 : f32 to vector<64x128xf32>
    %14 = arith.maximumf %12, %13 : vector<64x128xf32>
    %c0_12 = arith.constant 0 : index
    %c0_13 = arith.constant 0 : index
    %15 = vector.load %arg6[%c0_12, %c0_13] : memref<8x64xf32, #tpu.memory_space<vmem>>, vector<8x64xf32>
    %cst_14 = arith.constant dense<0.000000e+00> : vector<8x128xf32>
    %16 = tpu.matmul %15, %14, %cst_14 {dimension_numbers = #tpu.dot_dimension_numbers<[1], [0], [0], [1], [0, 0, 1, 1], [], []>} : vector<8x64xf32>, vector<64x128xf32>, vector<8x128xf32> -> vector<8x128xf32>
    %c0_15 = arith.constant 0 : index
    %c0_16 = arith.constant 0 : index
    %17 = vector.load %arg7[%c0_15, %c0_16] : memref<8x1xf32, #tpu.memory_space<vmem>>, vector<8x1xf32>
    %18 = vector.broadcast %17 : vector<8x1xf32> to vector<8x128xf32>
    %19 = arith.addf %16, %18 : vector<8x128xf32>
    %c0_17 = arith.constant 0 : index
    %c0_18 = arith.constant 0 : index
    %20 = vector.load %arg8[%c0_17, %c0_18] : memref<8x128xf32, #tpu.memory_space<vmem>>, vector<8x128xf32>
    tpu.vector_store %arg8[%c0_17, %c0_18], %19 {strides = array<i32>} : memref<8x128xf32, #tpu.memory_space<vmem>>, vector<8x128xf32>,
    return
  }
  func.func @transform_0(%arg0: i32) -> (i32, i32) {
    %c0_i32 = arith.constant 0 : i32
    %c0_i32_0 = arith.constant 0 : i32
    return %c0_i32, %arg0 : i32, i32
  }
  func.func @transform_1(%arg0: i32) -> (i32, i32) {
    %c0_i32 = arith.constant 0 : i32
    %c0_i32_0 = arith.constant 0 : i32
    %c0_i32_1 = arith.constant 0 : i32
    return %c0_i32, %c0_i32_0 : i32, i32
  }
  func.func @transform_2(%arg0: i32) -> (i32, i32) {
    %c0_i32 = arith.constant 0 : i32
    %c0_i32_0 = arith.constant 0 : i32
    %c0_i32_1 = arith.constant 0 : i32
    return %c0_i32, %c0_i32_0 : i32, i32
  }
  func.func @transform_3(%arg0: i32) -> (i32, i32) {
    %c0_i32 = arith.constant 0 : i32
    %c0_i32_0 = arith.constant 0 : i32
    %c0_i32_1 = arith.constant 0 : i32
    return %c0_i32, %c0_i32_0 : i32, i32
  }
  func.func @transform_4(%arg0: i32) -> (i32, i32) {
    %c0_i32 = arith.constant 0 : i32
    %c0_i32_0 = arith.constant 0 : i32
    %c0_i32_1 = arith.constant 0 : i32
    return %c0_i32, %c0_i32_0 : i32, i32
  }
  func.func @transform_5(%arg0: i32) -> (i32, i32) {
    %c0_i32 = arith.constant 0 : i32
    %c0_i32_0 = arith.constant 0 : i32
    %c0_i32_1 = arith.constant 0 : i32
    return %c0_i32, %c0_i32_0 : i32, i32
  }
  func.func @transform_6(%arg0: i32) -> (i32, i32) {
    %c0_i32 = arith.constant 0 : i32
    %c0_i32_0 = arith.constant 0 : i32
    %c0_i32_1 = arith.constant 0 : i32
    return %c0_i32, %c0_i32_0 : i32, i32
  }
  func.func @transform_7(%arg0: i32) -> (i32, i32) {
    %c0_i32 = arith.constant 0 : i32
    %c0_i32_0 = arith.constant 0 : i32
    return %c0_i32, %arg0 : i32, i32
  }
}

</mosaic_0001>

<llo_original>
// kernel: dqn_forward.1
$region0: #{dqn_forward.1}
  #allocation0 [shape = 'u32[]', space=smem, size = 0x4, offset = 0x4, fixed_abs, tag = 'smem constant byte address 0x4 - core index']
  #allocation1 [shape = 'u32[144,128]{1,0:T(1,128)}', space=vmem, size = 0x12000, scoped, tag = 'internal scratch']
  %s0 = inlined_call_operand.vmem [shape: f32[8,128], index: 0, kind: input, shape index: {}]
  %s1 = inlined_call_operand.vmem [shape: f32[64,8], index: 1, kind: input, shape index: {}]
  %s2 = inlined_call_operand.vmem [shape: f32[64,1], index: 2, kind: input, shape index: {}]
  %s3 = inlined_call_operand.vmem [shape: f32[64,64], index: 3, kind: input, shape index: {}]
  %s4 = inlined_call_operand.vmem [shape: f32[64,1], index: 4, kind: input, shape index: {}]
  %s5 = inlined_call_operand.vmem [shape: f32[8,64], index: 5, kind: input, shape index: {}]
  %s6 = inlined_call_operand.vmem [shape: f32[8,1], index: 6, kind: input, shape index: {}]
  %s7 = inlined_call_operand.vmem [shape: f32[8,128], index: 7, kind: output, shape index: {}]
  %s8 = sld [smem:[#allocation0]]
  $region38: #{dqn_forward.1} parent=0
    _
  %s10 = ssub.s32 1, %s8
  %s11 = scalar_select 0, %s10, %s8
  // Predicated region
  $region2: #{dqn_forward.1} parent=0 // pred_check
    _
  $region3: #{dqn_forward.1} parent=0 // pred_check_branch
    %13 = sbr.rel (0) target = $region5
  $region4: #{dqn_forward.1} parent=0 // pred_region
    _
  $region5: #{dqn_forward.1} parent=0 // pred_fallthru
    _
  // Predicated region
  $region6: #{dqn_forward.1} parent=0 // pred_check
    _
  $region7: #{dqn_forward.1} parent=0 // pred_check_branch
    %15 = sbr.rel (0) target = $region9
  $region8: #{dqn_forward.1} parent=0 // pred_region
    _
  $region9: #{dqn_forward.1} parent=0 // pred_fallthru
    _
  // Predicated region
  $region10: #{dqn_forward.1} parent=0 // pred_check
    _
  $region11: #{dqn_forward.1} parent=0 // pred_check_branch
    %17 = sbr.rel (0) target = $region13
  $region12: #{dqn_forward.1} parent=0 // pred_region
    _
  $region13: #{dqn_forward.1} parent=0 // pred_fallthru
    _
  // Predicated region
  $region14: #{dqn_forward.1} parent=0 // pred_check
    _
  $region15: #{dqn_forward.1} parent=0 // pred_check_branch
    %19 = sbr.rel (0) target = $region17
  $region16: #{dqn_forward.1} parent=0 // pred_region
    _
  $region17: #{dqn_forward.1} parent=0 // pred_fallthru
    _
  // Predicated region
  $region18: #{dqn_forward.1} parent=0 // pred_check
    _
  $region19: #{dqn_forward.1} parent=0 // pred_check_branch
    %21 = sbr.rel (0) target = $region21
  $region20: #{dqn_forward.1} parent=0 // pred_region
    _
  $region21: #{dqn_forward.1} parent=0 // pred_fallthru
    _
  // Predicated region
  $region22: #{dqn_forward.1} parent=0 // pred_check
    _
  $region23: #{dqn_forward.1} parent=0 // pred_check_branch
    %23 = sbr.rel (0) target = $region25
  $region24: #{dqn_forward.1} parent=0 // pred_region
    _
  $region25: #{dqn_forward.1} parent=0 // pred_fallthru
    _
  // Predicated region
  $region26: #{dqn_forward.1} parent=0 // pred_check
    _
  $region27: #{dqn_forward.1} parent=0 // pred_check_branch
    %25 = sbr.rel (0) target = $region29
  $region28: #{dqn_forward.1} parent=0 // pred_region
    _
  $region29: #{dqn_forward.1} parent=0 // pred_fallthru
    _
  %v26 = vld [vmem:[%s1] sm:$0xff]
  %v27 = vld [vmem:[%s1 + $0x8] sm:$0xff]
  %v28 = vld [vmem:[%s1 + $0x10] sm:$0xff]
  %v29 = vld [vmem:[%s1 + $0x18] sm:$0xff]
  %v30 = vld [vmem:[%s1 + $0x20] sm:$0xff]
  %v31 = vld [vmem:[%s1 + $0x28] sm:$0xff]
  %v32 = vld [vmem:[%s1 + $0x30] sm:$0xff]
  %v33 = vld [vmem:[%s1 + $0x38] sm:$0xff]
  %v34 = vld [vmem:[%s0] sm:$0xff]
  %v35 = vld [vmem:[%s2] sm:$0xff]
  %v36 = vld [vmem:[%s2 + $0x8] sm:$0xff]
  %v37 = vld [vmem:[%s2 + $0x10] sm:$0xff]
  %v38 = vld [vmem:[%s2 + $0x18] sm:$0xff]
  %v39 = vld [vmem:[%s2 + $0x20] sm:$0xff]
  %v40 = vld [vmem:[%s2 + $0x28] sm:$0xff]
  %v41 = vld [vmem:[%s2 + $0x30] sm:$0xff]
  %v42 = vld [vmem:[%s2 + $0x38] sm:$0xff]
  %44 = vset.pattern.permute.xlu0 0
  %45 = vperm.xlu0 %44, %v35
  %v46 = vpop.permute.xlu0 %45
  %49 = vset.pattern.permute.xlu0 0
  %50 = vperm.xlu0 %49, %v36
  %v51 = vpop.permute.xlu0 %50
  %54 = vset.pattern.permute.xlu0 0
  %55 = vperm.xlu0 %54, %v37
  %v56 = vpop.permute.xlu0 %55
  %59 = vset.pattern.permute.xlu0 0
  %60 = vperm.xlu0 %59, %v38
  %v61 = vpop.permute.xlu0 %60
  %64 = vset.pattern.permute.xlu0 0
  %65 = vperm.xlu0 %64, %v39
  %v66 = vpop.permute.xlu0 %65
  %69 = vset.pattern.permute.xlu0 0
  %70 = vperm.xlu0 %69, %v40
  %v71 = vpop.permute.xlu0 %70
  %74 = vset.pattern.permute.xlu0 0
  %75 = vperm.xlu0 %74, %v41
  %v76 = vpop.permute.xlu0 %75
  %79 = vset.pattern.permute.xlu0 0
  %80 = vperm.xlu0 %79, %v42
  %v81 = vpop.permute.xlu0 %80
  %vm83 = vcmask 64512
  %v85 = vsel %vm83, %v26, 0
  %v88 = vsel %vm83, %v27, 0
  %v91 = vsel %vm83, %v28, 0
  %v94 = vsel %vm83, %v29, 0
  %v97 = vsel %vm83, %v30, 0
  %v100 = vsel %vm83, %v31, 0
  %v103 = vsel %vm83, %v32, 0
  %v106 = vsel %vm83, %v33, 0
  %108 = vmatprep.subr.mxu0 0.0
  %109 = vmatpush1.msra.mxu0 0.0
  %110 = vmatprep.subr.mxu0 0.0
  %111 = vmatpush1.msra.mxu0 0.0
  %112 = vmatprep.subr.mxu0 0.0
  %113 = vmatpush1.msra.mxu0 0.0
  %114 = vmatprep.subr.mxu0 0.0
  %115 = vmatpush1.msra.mxu0 0.0
  %116 = vmatprep.subr.mxu0 0.0
  %117 = vmatpush1.msra.mxu0 0.0
  %118 = vmatprep.subr.mxu0 0.0
  %119 = vmatpush1.msra.mxu0 0.0
  %120 = vmatprep.subr.mxu0 0.0
  %121 = vmatpush1.msra.mxu0 0.0
  %122 = vmatprep.subr.mxu0 0.0
  %123 = vmatpush1.msra.mxu0 0.0
  %124 = vmatprep.subr.mxu0 0.0
  %125 = vmatpush1.msra.mxu0 0.0
  %126 = vmatprep.subr.mxu0 0.0
  %127 = vmatpush1.msra.mxu0 0.0
  %128 = vmatprep.subr.mxu0 0.0
  %129 = vmatpush1.msra.mxu0 0.0
  %130 = vmatprep.subr.mxu0 0.0
  %131 = vmatpush1.msra.mxu0 0.0
  %132 = vmatprep.subr.mxu0 0.0
  %133 = vmatpush1.msra.mxu0 0.0
  %134 = vmatprep.subr.mxu0 0.0
  %135 = vmatpush1.msra.mxu0 0.0
  %136 = vmatprep.subr.mxu0 0.0
  %137 = vmatpush1.msra.mxu0 0.0
  %138 = vmatprep.subr.mxu0 0.0
  %139 = vmatpush1.msra.mxu0 %v34
  %140 = vmatprep.subr.mxu0 0.0
  %141 = vmatpush2.msra.mxu0 0.0
  %142 = vmatprep.subr.mxu0 0.0
  %143 = vmatpush2.msra.mxu0 0.0
  %144 = vmatprep.subr.mxu0 0.0
  %145 = vmatpush2.msra.mxu0 0.0
  %146 = vmatprep.subr.mxu0 0.0
  %147 = vmatpush2.msra.mxu0 0.0
  %148 = vmatprep.subr.mxu0 0.0
  %149 = vmatpush2.msra.mxu0 0.0
  %150 = vmatprep.subr.mxu0 0.0
  %151 = vmatpush2.msra.mxu0 0.0
  %152 = vmatprep.subr.mxu0 0.0
  %153 = vmatpush2.msra.mxu0 0.0
  %154 = vmatprep.subr.mxu0 0.0
  %155 = vmatpush2.msra.mxu0 0.0
  %156 = vmatprep.subr.mxu0 0.0
  %157 = vmatpush2.msra.mxu0 0.0
  %158 = vmatprep.subr.mxu0 0.0
  %159 = vmatpush2.msra.mxu0 0.0
  %160 = vmatprep.subr.mxu0 0.0
  %161 = vmatpush2.msra.mxu0 0.0
  %162 = vmatprep.subr.mxu0 0.0
  %163 = vmatpush2.msra.mxu0 0.0
  %164 = vmatprep.subr.mxu0 0.0
  %165 = vmatpush2.msra.mxu0 0.0
  %166 = vmatprep.subr.mxu0 0.0
  %167 = vmatpush2.msra.mxu0 0.0
  %168 = vmatprep.subr.mxu0 0.0
  %169 = vmatpush2.msra.mxu0 0.0
  %170 = vmatprep.subr.mxu0 0.0
  %171 = vmatpush2.msra.mxu0 0.0
  %172 = vmatprep.mubr.f32.mxu0 0.0
  %173 = vmatmul.mubr.f32.gmra.mxu0 %v85
  %v174 = vpop.f32.mrf.mxu0
  %v175 = vadd.f32 %v46, %v174
  %v176 = vpop.f32.mrf.mxu0
  %177 = vmatprep.mubr.f32.mxu0 0.0
  %178 = vmatmul.mubr.f32.gmra.mxu0 %v88
  %v179 = vpop.f32.mrf.mxu0
  %v180 = vadd.f32 %v51, %v179
  %v181 = vpop.f32.mrf.mxu0
  %182 = vmatprep.mubr.f32.mxu0 0.0
  %183 = vmatmul.mubr.f32.gmra.mxu0 %v91
  %v184 = vpop.f32.mrf.mxu0
  %v185 = vadd.f32 %v56, %v184
  %v186 = vpop.f32.mrf.mxu0
  %187 = vmatprep.mubr.f32.mxu0 0.0
  %188 = vmatmul.mubr.f32.gmra.mxu0 %v94
  %v189 = vpop.f32.mrf.mxu0
  %v190 = vadd.f32 %v61, %v189
  %v191 = vpop.f32.mrf.mxu0
  %192 = vmatprep.mubr.f32.mxu0 0.0
  %193 = vmatmul.mubr.f32.gmra.mxu0 %v97
  %v194 = vpop.f32.mrf.mxu0
  %v195 = vadd.f32 %v66, %v194
  %v196 = vpop.f32.mrf.mxu0
  %197 = vmatprep.mubr.f32.mxu0 0.0
  %198 = vmatmul.mubr.f32.gmra.mxu0 %v100
  %v199 = vpop.f32.mrf.mxu0
  %v200 = vadd.f32 %v71, %v199
  %v201 = vpop.f32.mrf.mxu0
  %202 = vmatprep.mubr.f32.mxu0 0.0
  %203 = vmatmul.mubr.f32.gmra.mxu0 %v103
  %v204 = vpop.f32.mrf.mxu0
  %v205 = vadd.f32 %v76, %v204
  %v206 = vpop.f32.mrf.mxu0
  %207 = vmatprep.mubr.f32.mxu0 0.0
  %208 = vmatmul.mubr.f32.gmra.mxu0 %v106
  %v209 = vpop.f32.mrf.mxu0
  %v210 = vadd.f32 %v81, %v209
  %v211 = vpop.f32.mrf.mxu0
  %212 = vdwg.mxu0
  %v213 = vmax.f32 %v175, 0.0
  %v214 = vmax.f32 %v180, 0.0
  %v215 = vmax.f32 %v185, 0.0
  %v216 = vmax.f32 %v190, 0.0
  %v217 = vmax.f32 %v195, 0.0
  %v218 = vmax.f32 %v200, 0.0
  %v219 = vmax.f32 %v205, 0.0
  %v220 = vmax.f32 %v210, 0.0
  %v221 = vld [vmem:[%s3] sm:$0xff]
  %v222 = vld [vmem:[%s3 + $0x8] sm:$0xff]
  %v223 = vld [vmem:[%s3 + $0x10] sm:$0xff]
  %v224 = vld [vmem:[%s3 + $0x18] sm:$0xff]
  %v225 = vld [vmem:[%s3 + $0x20] sm:$0xff]
  %v226 = vld [vmem:[%s3 + $0x28] sm:$0xff]
  %v227 = vld [vmem:[%s3 + $0x30] sm:$0xff]
  %v228 = vld [vmem:[%s3 + $0x38] sm:$0xff]
  %v229 = vld [vmem:[%s4] sm:$0xff]
  %v230 = vld [vmem:[%s4 + $0x8] sm:$0xff]
  %v231 = vld [vmem:[%s4 + $0x10] sm:$0xff]
  %v232 = vld [vmem:[%s4 + $0x18] sm:$0xff]
  %v233 = vld [vmem:[%s4 + $0x20] sm:$0xff]
  %v234 = vld [vmem:[%s4 + $0x28] sm:$0xff]
  %v235 = vld [vmem:[%s4 + $0x30] sm:$0xff]
  %v236 = vld [vmem:[%s4 + $0x38] sm:$0xff]
  %238 = vset.pattern.permute.xlu0 0
  %239 = vperm.xlu0 %238, %v229
  %v240 = vpop.permute.xlu0 %239
  %243 = vset.pattern.permute.xlu0 0
  %244 = vperm.xlu0 %243, %v230
  %v245 = vpop.permute.xlu0 %244
  %248 = vset.pattern.permute.xlu0 0
  %249 = vperm.xlu0 %248, %v231
  %v250 = vpop.permute.xlu0 %249
  %253 = vset.pattern.permute.xlu0 0
  %254 = vperm.xlu0 %253, %v232
  %v255 = vpop.permute.xlu0 %254
  %258 = vset.pattern.permute.xlu0 0
  %259 = vperm.xlu0 %258, %v233
  %v260 = vpop.permute.xlu0 %259
  %263 = vset.pattern.permute.xlu0 0
  %264 = vperm.xlu0 %263, %v234
  %v265 = vpop.permute.xlu0 %264
  %268 = vset.pattern.permute.xlu0 0
  %269 = vperm.xlu0 %268, %v235
  %v270 = vpop.permute.xlu0 %269
  %273 = vset.pattern.permute.xlu0 0
  %274 = vperm.xlu0 %273, %v236
  %v275 = vpop.permute.xlu0 %274
  %vm277 = vcmask 523264
  %v279 = vsel %vm277, %v221, 0
  %v282 = vsel %vm277, %v222, 0
  %v285 = vsel %vm277, %v223, 0
  %v288 = vsel %vm277, %v224, 0
  %v291 = vsel %vm277, %v225, 0
  %v294 = vsel %vm277, %v226, 0
  %v297 = vsel %vm277, %v227, 0
  %v300 = vsel %vm277, %v228, 0
  %302 = vmatprep.subr.mxu0 0.0
  %303 = vmatpush1.msra.mxu0 0.0
  %304 = vmatprep.subr.mxu0 0.0
  %305 = vmatpush1.msra.mxu0 0.0
  %306 = vmatprep.subr.mxu0 0.0
  %307 = vmatpush1.msra.mxu0 0.0
  %308 = vmatprep.subr.mxu0 0.0
  %309 = vmatpush1.msra.mxu0 0.0
  %310 = vmatprep.subr.mxu0 0.0
  %311 = vmatpush1.msra.mxu0 0.0
  %312 = vmatprep.subr.mxu0 0.0
  %313 = vmatpush1.msra.mxu0 0.0
  %314 = vmatprep.subr.mxu0 0.0
  %315 = vmatpush1.msra.mxu0 0.0
  %316 = vmatprep.subr.mxu0 0.0
  %317 = vmatpush1.msra.mxu0 0.0
  %318 = vmatprep.subr.mxu0 0.0
  %319 = vmatpush1.msra.mxu0 %v220
  %320 = vmatprep.subr.mxu0 0.0
  %321 = vmatpush1.msra.mxu0 %v219
  %322 = vmatprep.subr.mxu0 0.0
  %323 = vmatpush1.msra.mxu0 %v218
  %324 = vmatprep.subr.mxu0 0.0
  %325 = vmatpush1.msra.mxu0 %v217
  %326 = vmatprep.subr.mxu0 0.0
  %327 = vmatpush1.msra.mxu0 %v216
  %328 = vmatprep.subr.mxu0 0.0
  %329 = vmatpush1.msra.mxu0 %v215
  %330 = vmatprep.subr.mxu0 0.0
  %331 = vmatpush1.msra.mxu0 %v214
  %332 = vmatprep.subr.mxu0 0.0
  %333 = vmatpush1.msra.mxu0 %v213
  %334 = vmatprep.subr.mxu0 0.0
  %335 = vmatpush2.msra.mxu0 0.0
  %336 = vmatprep.subr.mxu0 0.0
  %337 = vmatpush2.msra.mxu0 0.0
  %338 = vmatprep.subr.mxu0 0.0
  %339 = vmatpush2.msra.mxu0 0.0
  %340 = vmatprep.subr.mxu0 0.0
  %341 = vmatpush2.msra.mxu0 0.0
  %342 = vmatprep.subr.mxu0 0.0
  %343 = vmatpush2.msra.mxu0 0.0
  %344 = vmatprep.subr.mxu0 0.0
  %345 = vmatpush2.msra.mxu0 0.0
  %346 = vmatprep.subr.mxu0 0.0
  %347 = vmatpush2.msra.mxu0 0.0
  %348 = vmatprep.subr.mxu0 0.0
  %349 = vmatpush2.msra.mxu0 0.0
  %350 = vmatprep.subr.mxu0 0.0
  %351 = vmatpush2.msra.mxu0 0.0
  %352 = vmatprep.subr.mxu0 0.0
  %353 = vmatpush2.msra.mxu0 0.0
  %354 = vmatprep.subr.mxu0 0.0
  %355 = vmatpush2.msra.mxu0 0.0
  %356 = vmatprep.subr.mxu0 0.0
  %357 = vmatpush2.msra.mxu0 0.0
  %358 = vmatprep.subr.mxu0 0.0
  %359 = vmatpush2.msra.mxu0 0.0
  %360 = vmatprep.subr.mxu0 0.0
  %361 = vmatpush2.msra.mxu0 0.0
  %362 = vmatprep.subr.mxu0 0.0
  %363 = vmatpush2.msra.mxu0 0.0
  %364 = vmatprep.subr.mxu0 0.0
  %365 = vmatpush2.msra.mxu0 0.0
  %366 = vmatprep.mubr.f32.mxu0 0.0
  %367 = vmatmul.mubr.f32.gmra.mxu0 %v279
  %v368 = vpop.f32.mrf.mxu0
  %v369 = vadd.f32 %v240, %v368
  %v370 = vpop.f32.mrf.mxu0
  %371 = vmatprep.mubr.f32.mxu0 0.0
  %372 = vmatmul.mubr.f32.gmra.mxu0 %v282
  %v373 = vpop.f32.mrf.mxu0
  %v374 = vadd.f32 %v245, %v373
  %v375 = vpop.f32.mrf.mxu0
  %376 = vmatprep.mubr.f32.mxu0 0.0
  %377 = vmatmul.mubr.f32.gmra.mxu0 %v285
  %v378 = vpop.f32.mrf.mxu0
  %v379 = vadd.f32 %v250, %v378
  %v380 = vpop.f32.mrf.mxu0
  %381 = vmatprep.mubr.f32.mxu0 0.0
  %382 = vmatmul.mubr.f32.gmra.mxu0 %v288
  %v383 = vpop.f32.mrf.mxu0
  %v384 = vadd.f32 %v255, %v383
  %v385 = vpop.f32.mrf.mxu0
  %386 = vmatprep.mubr.f32.mxu0 0.0
  %387 = vmatmul.mubr.f32.gmra.mxu0 %v291
  %v388 = vpop.f32.mrf.mxu0
  %v389 = vadd.f32 %v260, %v388
  %v390 = vpop.f32.mrf.mxu0
  %391 = vmatprep.mubr.f32.mxu0 0.0
  %392 = vmatmul.mubr.f32.gmra.mxu0 %v294
  %v393 = vpop.f32.mrf.mxu0
  %v394 = vadd.f32 %v265, %v393
  %v395 = vpop.f32.mrf.mxu0
  %396 = vmatprep.mubr.f32.mxu0 0.0
  %397 = vmatmul.mubr.f32.gmra.mxu0 %v297
  %v398 = vpop.f32.mrf.mxu0
  %v399 = vadd.f32 %v270, %v398
  %v400 = vpop.f32.mrf.mxu0
  %401 = vmatprep.mubr.f32.mxu0 0.0
  %402 = vmatmul.mubr.f32.gmra.mxu0 %v300
  %v403 = vpop.f32.mrf.mxu0
  %v404 = vadd.f32 %v275, %v403
  %v405 = vpop.f32.mrf.mxu0
  %406 = vdwg.mxu0
  %v407 = vmax.f32 %v369, 0.0
  %v408 = vmax.f32 %v374, 0.0
  %v409 = vmax.f32 %v379, 0.0
  %v410 = vmax.f32 %v384, 0.0
  %v411 = vmax.f32 %v389, 0.0
  %v412 = vmax.f32 %v394, 0.0
  %v413 = vmax.f32 %v399, 0.0
  %v414 = vmax.f32 %v404, 0.0
  %v415 = vld [vmem:[%s5] sm:$0xff]
  %v416 = vld [vmem:[%s6] sm:$0xff]
  %418 = vset.pattern.permute.xlu0 0
  %419 = vperm.xlu0 %418, %v416
  %v420 = vpop.permute.xlu0 %419
  %v423 = vsel %vm277, %v415, 0
  %425 = vmatprep.subr.mxu0 0.0
  %426 = vmatpush1.msra.mxu0 0.0
  %427 = vmatprep.subr.mxu0 0.0
  %428 = vmatpush1.msra.mxu0 0.0
  %429 = vmatprep.subr.mxu0 0.0
  %430 = vmatpush1.msra.mxu0 0.0
  %431 = vmatprep.subr.mxu0 0.0
  %432 = vmatpush1.msra.mxu0 0.0
  %433 = vmatprep.subr.mxu0 0.0
  %434 = vmatpush1.msra.mxu0 0.0
  %435 = vmatprep.subr.mxu0 0.0
  %436 = vmatpush1.msra.mxu0 0.0
  %437 = vmatprep.subr.mxu0 0.0
  %438 = vmatpush1.msra.mxu0 0.0
  %439 = vmatprep.subr.mxu0 0.0
  %440 = vmatpush1.msra.mxu0 0.0
  %441 = vmatprep.subr.mxu0 0.0
  %442 = vmatpush1.msra.mxu0 %v414
  %443 = vmatprep.subr.mxu0 0.0
  %444 = vmatpush1.msra.mxu0 %v413
  %445 = vmatprep.subr.mxu0 0.0
  %446 = vmatpush1.msra.mxu0 %v412
  %447 = vmatprep.subr.mxu0 0.0
  %448 = vmatpush1.msra.mxu0 %v411
  %449 = vmatprep.subr.mxu0 0.0
  %450 = vmatpush1.msra.mxu0 %v410
  %451 = vmatprep.subr.mxu0 0.0
  %452 = vmatpush1.msra.mxu0 %v409
  %453 = vmatprep.subr.mxu0 0.0
  %454 = vmatpush1.msra.mxu0 %v408
  %455 = vmatprep.subr.mxu0 0.0
  %456 = vmatpush1.msra.mxu0 %v407
  %457 = vmatprep.subr.mxu0 0.0
  %458 = vmatpush2.msra.mxu0 0.0
  %459 = vmatprep.subr.mxu0 0.0
  %460 = vmatpush2.msra.mxu0 0.0
  %461 = vmatprep.subr.mxu0 0.0
  %462 = vmatpush2.msra.mxu0 0.0
  %463 = vmatprep.subr.mxu0 0.0
  %464 = vmatpush2.msra.mxu0 0.0
  %465 = vmatprep.subr.mxu0 0.0
  %466 = vmatpush2.msra.mxu0 0.0
  %467 = vmatprep.subr.mxu0 0.0
  %468 = vmatpush2.msra.mxu0 0.0
  %469 = vmatprep.subr.mxu0 0.0
  %470 = vmatpush2.msra.mxu0 0.0
  %471 = vmatprep.subr.mxu0 0.0
  %472 = vmatpush2.msra.mxu0 0.0
  %473 = vmatprep.subr.mxu0 0.0
  %474 = vmatpush2.msra.mxu0 0.0
  %475 = vmatprep.subr.mxu0 0.0
  %476 = vmatpush2.msra.mxu0 0.0
  %477 = vmatprep.subr.mxu0 0.0
  %478 = vmatpush2.msra.mxu0 0.0
  %479 = vmatprep.subr.mxu0 0.0
  %480 = vmatpush2.msra.mxu0 0.0
  %481 = vmatprep.subr.mxu0 0.0
  %482 = vmatpush2.msra.mxu0 0.0
  %483 = vmatprep.subr.mxu0 0.0
  %484 = vmatpush2.msra.mxu0 0.0
  %485 = vmatprep.subr.mxu0 0.0
  %486 = vmatpush2.msra.mxu0 0.0
  %487 = vmatprep.subr.mxu0 0.0
  %488 = vmatpush2.msra.mxu0 0.0
  %489 = vmatprep.mubr.f32.mxu0 0.0
  %490 = vmatmul.mubr.f32.gmra.mxu0 %v423
  %v491 = vpop.f32.mrf.mxu0
  %v492 = vadd.f32 %v420, %v491
  %v493 = vpop.f32.mrf.mxu0
  %494 = vdwg.mxu0
  %495 = vst [vmem:[%s7] sm:$0xff] %v492
  // Predicated region
  $region30: #{dqn_forward.1} parent=0 // pred_check
    _
  $region31: #{dqn_forward.1} parent=0 // pred_check_branch
    %497 = sbr.rel (0) target = $region33
  $region32: #{dqn_forward.1} parent=0 // pred_region
    _
  $region33: #{dqn_forward.1} parent=0 // pred_fallthru
    _
  // Predicated region
  $region34: #{dqn_forward.1} parent=0 // pred_check
    _
  $region35: #{dqn_forward.1} parent=0 // pred_check_branch
    %499 = sbr.rel (0) target = $region37
  $region36: #{dqn_forward.1} parent=0 // pred_region
    _
  $region37: #{dqn_forward.1} parent=0 // pred_fallthru
    _

</llo_original>
